<compile_context>
chip_gen: v7x
topology: tpu7x:2x2x1
jax: 0.10.0
libtpu: 0.0.40
codegen_flags: <defaults>
</compile_context>

<pallas_src>
import jax
import jax.numpy as jnp
from jax.experimental import pallas as pl
from jax.experimental.pallas import tpu as pltpu

MID_DIM = 400
OUT_DIM = 1
LANE = 128


def _round_up(x, m):
    return ((x + m - 1) // m) * m


MID_PAD = _round_up(MID_DIM, LANE)   # 512  (lane-dense hidden width)
OUT_PAD = _round_up(OUT_DIM, LANE)   # 128  (lane-dense layer-3 matmul width)
OUT_STORE = 8                        # columns actually written back to HBM


# --------------------------------------------------------------------------
# Pallas kernel: full critic forward
#   Linear(inp, 400) -> ReLU -> Linear(400, 400) -> ReLU -> Linear(400, 1)
# Weights are lane-padded bf16; biases are lane-padded f32; input is bf16 with
# the 1/max_action action scaling already folded into w1.
# --------------------------------------------------------------------------
def critic_kernel(x_ref, w1_ref, b1_ref, w2_ref, b2_ref, w3_ref, b3_ref, out_ref):
    x = x_ref[...]                                             # (bb, inp_dim) bf16

    # Layer 1: single fused matmul (replaces the 3 split tiny-K matmuls)
    h1 = jnp.dot(x, w1_ref[...], preferred_element_type=jnp.float32) + b1_ref[...]
    h1 = jnp.maximum(h1, 0.0).astype(jnp.bfloat16)

    # Layer 2
    h2 = jnp.dot(h1, w2_ref[...], preferred_element_type=jnp.float32) + b2_ref[...]
    h2 = jnp.maximum(h2, 0.0).astype(jnp.bfloat16)

    # Layer 3 (no activation): compute at lane-dense N=128, store only the
    # first OUT_STORE columns -> 16x less output HBM writeback.
    q = jnp.dot(h2, w3_ref[...], preferred_element_type=jnp.float32) + b3_ref[...]
    out_ref[...] = q[:, :OUT_STORE]


# --------------------------------------------------------------------------
# Offline parameter preparation: fold action scale into w1, zero-pad lanes,
# cast weights to bf16 (biases stay f32).
# --------------------------------------------------------------------------
def _pad2d(a, rows, cols):
    return jnp.pad(a, ((0, rows - a.shape[0]), (0, cols - a.shape[1])))


def prepare_params(params, obs_dim, action_dim, goal_dim, max_action):
    w1, b1, w2, b2, w3, b3 = params
    inp_dim = obs_dim + action_dim + goal_dim
    inv_max = 1.0 / float(max_action)

    # Fold actions/max_action into the action rows of w1 (one-time transform).
    row_scale = jnp.concatenate([
        jnp.ones((obs_dim,), jnp.float32),
        jnp.full((action_dim,), inv_max, jnp.float32),
        jnp.ones((goal_dim,), jnp.float32),
    ])
    w1s = w1 * row_scale[:, None]

    w1p = _pad2d(w1s, inp_dim, MID_PAD).astype(jnp.bfloat16)
    b1p = _pad2d(b1, 1, MID_PAD).astype(jnp.float32)
    w2p = _pad2d(w2, MID_PAD, MID_PAD).astype(jnp.bfloat16)
    b2p = _pad2d(b2, 1, MID_PAD).astype(jnp.float32)
    w3p = _pad2d(w3, MID_PAD, OUT_PAD).astype(jnp.bfloat16)
    b3p = _pad2d(b3, 1, OUT_PAD).astype(jnp.float32)
    return (w1p, b1p, w2p, b2p, w3p, b3p)


# --------------------------------------------------------------------------
# Batch-tile selection: big tiles (amortize per-step overhead), multiples of
# 16 (bf16 sublane packing), and >= 2 grid steps whenever the batch is large
# enough to split so a 2-TC chip (v7x) keeps both cores busy.
# --------------------------------------------------------------------------
def _pick_batch_tile(batch, max_block):
    rb = _round_up(batch, 8)
    if rb <= 16:
        return rb, rb                      # one step; block == full padded array
    rb = _round_up(batch, 16)
    if rb <= max_block:
        bb = _round_up(pl.cdiv(rb, 2), 16)  # exactly 2 grid steps
    else:
        bb = max_block                      # >= 2 grid steps by construction
    pb = _round_up(rb, bb)
    return bb, pb


# --------------------------------------------------------------------------
# Wrapper: fused+bf16 input, batch-tiled pallas_call, weights VMEM-resident.
# --------------------------------------------------------------------------
def critic_forward(obs, actions, goal, prepared, *, max_batch_block=1024):
    w1p, b1p, w2p, b2p, w3p, b3p = prepared
    batch = obs.shape[0]
    obs_dim, action_dim, goal_dim = obs.shape[1], actions.shape[1], goal.shape[1]
    inp_dim = obs_dim + action_dim + goal_dim

    # Wrapper-side concat + bf16 cast (action scaling already folded into w1p).
    x = jnp.concatenate([obs, actions, goal], axis=1).astype(jnp.bfloat16)

    bb, pb = _pick_batch_tile(batch, max_batch_block)
    if pb != batch:
        x = jnp.pad(x, ((0, pb - batch), (0, 0)))

    const = lambda i: (0, 0)   # weights/biases: same block every grid step
    in_specs = [
        pl.BlockSpec((bb, inp_dim), lambda i: (i, 0)),
        pl.BlockSpec((inp_dim, MID_PAD), const),
        pl.BlockSpec((1, MID_PAD), const),
        pl.BlockSpec((MID_PAD, MID_PAD), const),
        pl.BlockSpec((1, MID_PAD), const),
        pl.BlockSpec((MID_PAD, OUT_PAD), const),
        pl.BlockSpec((1, OUT_PAD), const),
    ]
    out_spec = pl.BlockSpec((bb, OUT_STORE), lambda i: (i, 0))

    flops = 2 * batch * (inp_dim * MID_DIM + MID_DIM * MID_DIM + MID_DIM * OUT_DIM)
    bytes_accessed = int(sum(int(a.nbytes) for a in prepared)
                         + x.nbytes + pb * OUT_STORE * 4)

    out_padded = pl.pallas_call(
        critic_kernel,
        out_shape=jax.ShapeDtypeStruct((pb, OUT_STORE), jnp.float32),
        grid=(pb // bb,),
        in_specs=in_specs,
        out_specs=out_spec,
        compiler_params=pltpu.CompilerParams(
            dimension_semantics=("parallel",)),
        cost_estimate=pl.CostEstimate(
            flops=flops, transcendentals=0, bytes_accessed=bytes_accessed),
    )(x, w1p, b1p, w2p, b2p, w3p, b3p)

    return out_padded[:batch, :OUT_DIM]


# --------------------------------------------------------------------------
# Deterministic parameter init (PyTorch nn.Linear default: U(-1/sqrt(in), .))
# Weights stored as [in_features, out_features] (== W_torch.T).
# --------------------------------------------------------------------------
def init_params(key, inp_dim, mid_dim, out_dim):
    ks = jax.random.split(key, 6)

    def linear(kw, kb, fan_in, fan_out):
        bound = 1.0 / jnp.sqrt(fan_in)
        w = jax.random.uniform(kw, (fan_in, fan_out), jnp.float32, -bound, bound)
        b = jax.random.uniform(kb, (1, fan_out), jnp.float32, -bound, bound)
        return w, b

    w1, b1 = linear(ks[0], ks[1], inp_dim, mid_dim)
    w2, b2 = linear(ks[2], ks[3], mid_dim, mid_dim)
    w3, b3 = linear(ks[4], ks[5], mid_dim, out_dim)
    return (w1, b1, w2, b2, w3, b3)


# --------------------------------------------------------------------------
# Pure-JAX f32 reference (mirrors the PyTorch forward exactly)
# --------------------------------------------------------------------------
def critic_reference(obs, actions, goal, params, max_action):
    w1, b1, w2, b2, w3, b3 = params
    x = jnp.concatenate([obs, actions / max_action], axis=1)
    x = jnp.concatenate([x, goal], axis=1)
    h1 = jnp.maximum(x @ w1 + b1, 0.0)
    h2 = jnp.maximum(h1 @ w2 + b2, 0.0)
    return h2 @ w3 + b3


if __name__ == "__main__":
    # env_params: small synthetic shapes
    obs_dim, action_dim, goal_dim = 10, 4, 5
    max_action = 2.0
    inp_dim = obs_dim + action_dim + goal_dim

    key = jax.random.PRNGKey(0)
    k_obs, k_act, k_goal, k_par = jax.random.split(key, 4)

    params = init_params(k_par, inp_dim, MID_DIM, OUT_DIM)
    prepared = prepare_params(params, obs_dim, action_dim, goal_dim, max_action)

    # Test 1: tiny batch (single grid step, block == full padded array).
    batch = 8
    obs = jax.random.normal(k_obs, (batch, obs_dim), jnp.float32)
    actions = jax.random.normal(k_act, (batch, action_dim), jnp.float32) * max_action
    goal = jax.random.normal(k_goal, (batch, goal_dim), jnp.float32)

    out = jax.block_until_ready(critic_forward(obs, actions, goal, prepared))
    ref = critic_reference(obs, actions, goal, params, max_action)
    assert out.shape == (batch, OUT_DIM), out.shape
    # bf16 weights/activations with f32 accumulation: ~1e-2 abs error expected.
    assert jnp.allclose(out, ref, atol=5e-2, rtol=5e-2), (out, ref)

    # Test 2: larger batch exercising the 2-step tiled path (row padding + grid).
    batch2 = 40
    k2o, k2a, k2g = jax.random.split(jax.random.PRNGKey(1), 3)
    obs2 = jax.random.normal(k2o, (batch2, obs_dim), jnp.float32)
    actions2 = jax.random.normal(k2a, (batch2, action_dim), jnp.float32) * max_action
    goal2 = jax.random.normal(k2g, (batch2, goal_dim), jnp.float32)

    out2 = jax.block_until_ready(critic_forward(obs2, actions2, goal2, prepared))
    ref2 = critic_reference(obs2, actions2, goal2, params, max_action)
    assert out2.shape == (batch2, OUT_DIM), out2.shape
    assert jnp.allclose(out2, ref2, atol=5e-2, rtol=5e-2), (out2, ref2)

    print("KERNEL_OK")
</pallas_src>

<mosaic_0001>
module attributes {stable_mosaic.version = 11 : i64} {
  func.func @critic_kernel(%arg0: i32, %arg1: memref<8x19xbf16, #tpu.memory_space<vmem>>, %arg2: memref<19x512xbf16, #tpu.memory_space<vmem>>, %arg3: memref<1x512xf32, #tpu.memory_space<vmem>>, %arg4: memref<512x512xbf16, #tpu.memory_space<vmem>>, %arg5: memref<1x512xf32, #tpu.memory_space<vmem>>, %arg6: memref<512x128xbf16, #tpu.memory_space<vmem>>, %arg7: memref<1x128xf32, #tpu.memory_space<vmem>>, %arg8: memref<8x8xf32, #tpu.memory_space<vmem>>) attributes {dimension_semantics = [#tpu.dimension_semantics<parallel>], iteration_bounds = array<i64: 1>, scalar_prefetch = 0 : i64, scratch_operands = 0 : i64, tpu.core_type = #tpu.core_type<tc>, window_params = [{transform_indices = @transform_0, window_bounds = array<i64: 8, 19>}, {pipeline_mode = #tpu.pipeline_mode<synchronous>, transform_indices = @transform_1, window_bounds = array<i64: 19, 512>}, {pipeline_mode = #tpu.pipeline_mode<synchronous>, transform_indices = @transform_2, window_bounds = array<i64: 1, 512>}, {pipeline_mode = #tpu.pipeline_mode<synchronous>, transform_indices = @transform_3, window_bounds = array<i64: 512, 512>}, {pipeline_mode = #tpu.pipeline_mode<synchronous>, transform_indices = @transform_4, window_bounds = array<i64: 1, 512>}, {pipeline_mode = #tpu.pipeline_mode<synchronous>, transform_indices = @transform_5, window_bounds = array<i64: 512, 128>}, {pipeline_mode = #tpu.pipeline_mode<synchronous>, transform_indices = @transform_6, window_bounds = array<i64: 1, 128>}, {transform_indices = @transform_7, window_bounds = array<i64: 8, 8>}]} {
    %c0 = arith.constant 0 : index
    %c0_0 = arith.constant 0 : index
    %0 = vector.load %arg1[%c0, %c0_0] : memref<8x19xbf16, #tpu.memory_space<vmem>>, vector<8x19xbf16>
    %c0_1 = arith.constant 0 : index
    %c0_2 = arith.constant 0 : index
    %1 = vector.load %arg2[%c0_1, %c0_2] : memref<19x512xbf16, #tpu.memory_space<vmem>>, vector<19x512xbf16>
    %cst = arith.constant dense<0.000000e+00> : vector<8x512xf32>
    %2 = tpu.matmul %0, %1, %cst {dimension_numbers = #tpu.dot_dimension_numbers<[1], [0], [0], [1], [0, 0, 1, 1], [], []>} : vector<8x19xbf16>, vector<19x512xbf16>, vector<8x512xf32> -> vector<8x512xf32>
    %c0_3 = arith.constant 0 : index
    %c0_4 = arith.constant 0 : index
    %3 = vector.load %arg3[%c0_3, %c0_4] : memref<1x512xf32, #tpu.memory_space<vmem>>, vector<1x512xf32>
    %4 = vector.broadcast %3 : vector<1x512xf32> to vector<8x512xf32>
    %5 = arith.addf %2, %4 : vector<8x512xf32>
    %cst_5 = arith.constant 0.000000e+00 : f32
    %6 = vector.broadcast %cst_5 : f32 to vector<8x512xf32>
    %7 = arith.maximumf %5, %6 : vector<8x512xf32>
    %8 = arith.truncf %7 : vector<8x512xf32> to vector<8x512xbf16>
    %c0_6 = arith.constant 0 : index
    %c0_7 = arith.constant 0 : index
    %9 = vector.load %arg4[%c0_6, %c0_7] : memref<512x512xbf16, #tpu.memory_space<vmem>>, vector<512x512xbf16>
    %cst_8 = arith.constant dense<0.000000e+00> : vector<8x512xf32>
    %10 = tpu.matmul %8, %9, %cst_8 {dimension_numbers = #tpu.dot_dimension_numbers<[1], [0], [0], [1], [0, 0, 1, 1], [], []>} : vector<8x512xbf16>, vector<512x512xbf16>, vector<8x512xf32> -> vector<8x512xf32>
    %c0_9 = arith.constant 0 : index
    %c0_10 = arith.constant 0 : index
    %11 = vector.load %arg5[%c0_9, %c0_10] : memref<1x512xf32, #tpu.memory_space<vmem>>, vector<1x512xf32>
    %12 = vector.broadcast %11 : vector<1x512xf32> to vector<8x512xf32>
    %13 = arith.addf %10, %12 : vector<8x512xf32>
    %cst_11 = arith.constant 0.000000e+00 : f32
    %14 = vector.broadcast %cst_11 : f32 to vector<8x512xf32>
    %15 = arith.maximumf %13, %14 : vector<8x512xf32>
    %16 = arith.truncf %15 : vector<8x512xf32> to vector<8x512xbf16>
    %c0_12 = arith.constant 0 : index
    %c0_13 = arith.constant 0 : index
    %17 = vector.load %arg6[%c0_12, %c0_13] : memref<512x128xbf16, #tpu.memory_space<vmem>>, vector<512x128xbf16>
    %cst_14 = arith.constant dense<0.000000e+00> : vector<8x128xf32>
    %18 = tpu.matmul %16, %17, %cst_14 {dimension_numbers = #tpu.dot_dimension_numbers<[1], [0], [0], [1], [0, 0, 1, 1], [], []>} : vector<8x512xbf16>, vector<512x128xbf16>, vector<8x128xf32> -> vector<8x128xf32>
    %c0_15 = arith.constant 0 : index
    %c0_16 = arith.constant 0 : index
    %19 = vector.load %arg7[%c0_15, %c0_16] : memref<1x128xf32, #tpu.memory_space<vmem>>, vector<1x128xf32>
    %20 = vector.broadcast %19 : vector<1x128xf32> to vector<8x128xf32>
    %21 = arith.addf %18, %20 : vector<8x128xf32>
    %22 = vector.extract_strided_slice %21 {offsets = [0, 0], sizes = [8, 8], strides = [1, 1]} : vector<8x128xf32> to vector<8x8xf32>
    %c0_17 = arith.constant 0 : index
    %c0_18 = arith.constant 0 : index
    %23 = vector.load %arg8[%c0_17, %c0_18] : memref<8x8xf32, #tpu.memory_space<vmem>>, vector<8x8xf32>
    tpu.vector_store %arg8[%c0_17, %c0_18], %22 {strides = array<i32>} : memref<8x8xf32, #tpu.memory_space<vmem>>, vector<8x8xf32>,
    return
  }
  func.func @transform_0(%arg0: i32) -> (i32, i32) {
    %c0_i32 = arith.constant 0 : i32
    %c0_i32_0 = arith.constant 0 : i32
    return %arg0, %c0_i32 : i32, i32
  }
  func.func @transform_1(%arg0: i32) -> (i32, i32) {
    %c0_i32 = arith.constant 0 : i32
    %c0_i32_0 = arith.constant 0 : i32
    %c0_i32_1 = arith.constant 0 : i32
    return %c0_i32, %c0_i32_0 : i32, i32
  }
  func.func @transform_2(%arg0: i32) -> (i32, i32) {
    %c0_i32 = arith.constant 0 : i32
    %c0_i32_0 = arith.constant 0 : i32
    %c0_i32_1 = arith.constant 0 : i32
    return %c0_i32, %c0_i32_0 : i32, i32
  }
  func.func @transform_3(%arg0: i32) -> (i32, i32) {
    %c0_i32 = arith.constant 0 : i32
    %c0_i32_0 = arith.constant 0 : i32
    %c0_i32_1 = arith.constant 0 : i32
    return %c0_i32, %c0_i32_0 : i32, i32
  }
  func.func @transform_4(%arg0: i32) -> (i32, i32) {
    %c0_i32 = arith.constant 0 : i32
    %c0_i32_0 = arith.constant 0 : i32
    %c0_i32_1 = arith.constant 0 : i32
    return %c0_i32, %c0_i32_0 : i32, i32
  }
  func.func @transform_5(%arg0: i32) -> (i32, i32) {
    %c0_i32 = arith.constant 0 : i32
    %c0_i32_0 = arith.constant 0 : i32
    %c0_i32_1 = arith.constant 0 : i32
    return %c0_i32, %c0_i32_0 : i32, i32
  }
  func.func @transform_6(%arg0: i32) -> (i32, i32) {
    %c0_i32 = arith.constant 0 : i32
    %c0_i32_0 = arith.constant 0 : i32
    %c0_i32_1 = arith.constant 0 : i32
    return %c0_i32, %c0_i32_0 : i32, i32
  }
  func.func @transform_7(%arg0: i32) -> (i32, i32) {
    %c0_i32 = arith.constant 0 : i32
    %c0_i32_0 = arith.constant 0 : i32
    return %arg0, %c0_i32 : i32, i32
  }
}

</mosaic_0001>

<llo_original>
// kernel: tpu_custom_call.1
$region0: #{tpu_custom_call.1}
  #allocation0 [shape = 'u32[]', space=smem, size = 0x4, offset = 0x4, fixed_abs, tag = 'smem constant byte address 0x4 - core index']
  #allocation1 [shape = 'u32[144,128]{1,0:T(1,128)}', space=vmem, size = 0x12000, scoped, tag = 'internal scratch']
  %s0 = inlined_call_operand.hbm [shape: bf16[8,19], index: 0, kind: input, shape index: {}]
  %s1 = inlined_call_operand.hbm [shape: bf16[19,512], index: 1, kind: input, shape index: {}]
  %s2 = inlined_call_operand.vmem [shape: f32[1,512], index: 2, kind: input, shape index: {}]
  %s3 = inlined_call_operand.hbm [shape: bf16[512,512], index: 3, kind: input, shape index: {}]
  %s4 = inlined_call_operand.vmem [shape: f32[1,512], index: 4, kind: input, shape index: {}]
  %s5 = inlined_call_operand.hbm [shape: bf16[512,128], index: 5, kind: input, shape index: {}]
  %s6 = inlined_call_operand.vmem [shape: f32[1,128], index: 6, kind: input, shape index: {}]
  %s7 = inlined_call_operand.hbm [shape: f32[8,8], index: 7, kind: output, shape index: {}]
  %s8 = sld [smem:[#allocation0]]
  $region54: #{tpu_custom_call.1} parent=0
    _
  %s10 = ssub.s32 1, %s8
  %s11 = scalar_select 0, %s10, %s8
  $region1: #{tpu_custom_call.1} parent=0
    #allocation2 [shape = 'u8[2048]{0}', space=vmem, size = 0x800, scoped, tag = 'input window, operand 0, single buffered']
    #allocation3 [shape = 's32[1]{0}', space=sflag, size = 0x4, scoped, tag = 'scoped memory for tpu_custom_call.1']
    #allocation4 [shape = 's32[1]{0}', space=sflag, size = 0x4, scoped, tag = 'scoped memory for tpu_custom_call.1']
    #allocation5 [shape = 'u8[24576]{0}', space=vmem, size = 0x6000, scoped, tag = 'input window, operand 1, single buffered']
    #allocation6 [shape = 's32[1]{0}', space=sflag, size = 0x4, scoped, tag = 'scoped memory for tpu_custom_call.1']
    #allocation7 [shape = 'u8[524288]{0}', space=vmem, size = 0x80000, scoped, tag = 'input window, operand 3, single buffered']
    #allocation8 [shape = 'u8[131072]{0}', space=vmem, size = 0x20000, scoped, tag = 'input window, operand 5, single buffered']
    #allocation9 [shape = 's32[1]{0}', space=sflag, size = 0x4, scoped, tag = 'scoped memory for tpu_custom_call.1']
    #allocation10 [shape = 'u8[4096]{0}', space=vmem, size = 0x1000, scoped, tag = 'output window, operand 0, single buffered']
    %12 = vsyncpa [#allocation3], 0
    %13 = vsyncpa [#allocation6], 0
    %14 = vsyncpa [#allocation9], 0
    %15 = vsyncpa [#allocation4], 0
    // Predicated region
    $region2: #{tpu_custom_call.1} parent=1 // pred_check
      _
    $region3: #{tpu_custom_call.1} parent=1 // pred_check_branch
      %17 = sbr.rel (0) target = $region5
    $region4: #{tpu_custom_call.1} parent=1 // pred_region
      %s19 = ssub.s32 64, 64
      %20 = vsyncadd [#allocation3], %s19
      %s22 = sshll.u32 [#allocation2], 4
      %s23 = int_to_ptr.vmem [resolvable:$true] %s22
      %25 = dma.hbm_to_vmem [thread:$0]  %s0, 64, %s23, [#allocation3]
    $region5: #{tpu_custom_call.1} parent=1 // pred_fallthru
      _
    // Predicated region
    $region6: #{tpu_custom_call.1} parent=1 // pred_check
      _
    $region7: #{tpu_custom_call.1} parent=1 // pred_check_branch
      %27 = sbr.rel (0) target = $region9
    $region8: #{tpu_custom_call.1} parent=1 // pred_region
      %s29 = ssub.s32 768, 768
      %30 = vsyncadd [#allocation6], %s29
      %s31 = sshll.u32 [#allocation5], 4
      %s32 = int_to_ptr.vmem [resolvable:$true] %s31
      %37 = dma.hbm_to_vmem [thread:$0]  %s1, 768, %s32, [#allocation6], 256, 256, 16
    $region9: #{tpu_custom_call.1} parent=1 // pred_fallthru
      _
    // Predicated region
    $region10: #{tpu_custom_call.1} parent=1 // pred_check
      _
    $region11: #{tpu_custom_call.1} parent=1 // pred_check_branch
      %39 = sbr.rel (0) target = $region13
    $region12: #{tpu_custom_call.1} parent=1 // pred_region
      _
    $region13: #{tpu_custom_call.1} parent=1 // pred_fallthru
      _
    // Predicated region
    $region14: #{tpu_custom_call.1} parent=1 // pred_check
      _
    $region15: #{tpu_custom_call.1} parent=1 // pred_check_branch
      %41 = sbr.rel (0) target = $region17
    $region16: #{tpu_custom_call.1} parent=1 // pred_region
      %s43 = ssub.s32 16384, 16384
      %44 = vsyncadd [#allocation6], %s43
      %s45 = sshll.u32 [#allocation7], 4
      %s46 = int_to_ptr.vmem [resolvable:$true] %s45
      %51 = dma.hbm_to_vmem [thread:$0]  %s3, 16384, %s46, [#allocation6], 256, 256, 16
    $region17: #{tpu_custom_call.1} parent=1 // pred_fallthru
      _
    // Predicated region
    $region18: #{tpu_custom_call.1} parent=1 // pred_check
      _
    $region19: #{tpu_custom_call.1} parent=1 // pred_check_branch
      %53 = sbr.rel (0) target = $region21
    $region20: #{tpu_custom_call.1} parent=1 // pred_region
      _
    $region21: #{tpu_custom_call.1} parent=1 // pred_fallthru
      _
    // Predicated region
    $region22: #{tpu_custom_call.1} parent=1 // pred_check
      _
    $region23: #{tpu_custom_call.1} parent=1 // pred_check_branch
      %55 = sbr.rel (0) target = $region25
    $region24: #{tpu_custom_call.1} parent=1 // pred_region
      %s57 = ssub.s32 4096, 4096
      %58 = vsyncadd [#allocation9], %s57
      %s59 = sshll.u32 [#allocation8], 4
      %s60 = int_to_ptr.vmem [resolvable:$true] %s59
      %65 = dma.hbm_to_vmem [thread:$0]  %s5, 4096, %s60, [#allocation9], 64, 64, 4
    $region25: #{tpu_custom_call.1} parent=1 // pred_fallthru
      _
    // Predicated region
    $region26: #{tpu_custom_call.1} parent=1 // pred_check
      _
    $region27: #{tpu_custom_call.1} parent=1 // pred_check_branch
      %67 = sbr.rel (0) target = $region29
    $region28: #{tpu_custom_call.1} parent=1 // pred_region
      _
    $region29: #{tpu_custom_call.1} parent=1 // pred_fallthru
      _
    // Predicated region
    $region30: #{tpu_custom_call.1} parent=1 // pred_check
      _
    $region31: #{tpu_custom_call.1} parent=1 // pred_check_branch
      %69 = sbr.rel (0) target = $region33
    $region32: #{tpu_custom_call.1} parent=1 // pred_region
      %70 = dma.done [#allocation3], 64
    $region33: #{tpu_custom_call.1} parent=1 // pred_fallthru
      _
    // Predicated region
    $region34: #{tpu_custom_call.1} parent=1 // pred_check
      _
    $region35: #{tpu_custom_call.1} parent=1 // pred_check_branch
      %72 = sbr.rel (0) target = $region37
    $region36: #{tpu_custom_call.1} parent=1 // pred_region
      %73 = dma.done [#allocation6], 768
    $region37: #{tpu_custom_call.1} parent=1 // pred_fallthru
      _
    // Predicated region
    $region38: #{tpu_custom_call.1} parent=1 // pred_check
      _
    $region39: #{tpu_custom_call.1} parent=1 // pred_check_branch
      %75 = sbr.rel (0) target = $region41
    $region40: #{tpu_custom_call.1} parent=1 // pred_region
      %76 = dma.done [#allocation6], 16384
    $region41: #{tpu_custom_call.1} parent=1 // pred_fallthru
      _
    // Predicated region
    $region42: #{tpu_custom_call.1} parent=1 // pred_check
      _
    $region43: #{tpu_custom_call.1} parent=1 // pred_check_branch
      %78 = sbr.rel (0) target = $region45
    $region44: #{tpu_custom_call.1} parent=1 // pred_region
      %79 = dma.done [#allocation9], 4096
    $region45: #{tpu_custom_call.1} parent=1 // pred_fallthru
      _
    %v81 = vld [vmem:[#allocation2] sm:$0xf]
    %v82 = vld [vmem:[#allocation5] sm:$0xff]
    %v83 = vld [vmem:[#allocation5 + $0x8] sm:$0xff]
    %v84 = vld [vmem:[#allocation5 + $0x10] sm:$0xff]
    %v85 = vld [vmem:[#allocation5 + $0x18] sm:$0xff]
    %v86 = vld [vmem:[#allocation5 + $0x20] sm:$0x33]
    %v87 = vld [vmem:[#allocation5 + $0x28] sm:$0x33]
    %v88 = vld [vmem:[%s2] sm:$0xf]
    %v90 = vlaneseq
    %v91 = vshrl.u32 %v90, 7
    %v92 = vsub.s32 0, %v91
    %v93 = vrot.slane %v88, %v92
    %v94 = vlaneseq
    %v95 = vshrl.u32 %v94, 7
    %v96 = vsub.s32 1, %v95
    %v97 = vrot.slane %v88, %v96
    %v98 = vlaneseq
    %v99 = vshrl.u32 %v98, 7
    %v100 = vsub.s32 2, %v99
    %v101 = vrot.slane %v88, %v100
    %v102 = vlaneseq
    %v103 = vshrl.u32 %v102, 7
    %v104 = vsub.s32 3, %v103
    %v105 = vrot.slane %v88, %v104
    %v116 = vunpack.c.l.b16 %v82
    %v117 = vunpack.c.h.b16 %v82
    %v118 = vunpack.c.l.b16 %v83
    %v119 = vunpack.c.h.b16 %v83
    %v120 = vunpack.c.l.b16 %v84
    %v121 = vunpack.c.h.b16 %v84
    %v122 = vunpack.c.l.b16 %v85
    %v123 = vunpack.c.h.b16 %v85
    %v124 = vunpack.c.l.b16 %v86
    %v125 = vunpack.c.h.b16 %v86
    %v126 = vunpack.c.l.b16 %v87
    %v127 = vunpack.c.h.b16 %v87
    %v128 = vpack.c.b16 %v120, %v116
    %v129 = vpack.c.b16 %v121, %v117
    %v130 = vpack.c.b16 %v122, %v118
    %v131 = vpack.c.b16 %v123, %v119
    %v132 = vpack.c.b16 %v124, %v124
    %v133 = vpack.c.b16 %v125, %v125
    %v134 = vpack.c.b16 %v126, %v126
    %v135 = vpack.c.b16 %v127, %v127
    %vm140 = vcmask 154624
    %v142 = vsel %vm140, %v81, 0
    %vm144 = vcmask 1040384
    %vm145 = vcmask 1041408
    %v146 = vsel %vm144, 4294967295, 65535
    %v147 = vsel %vm145, %v146, 0
    %v149 = vand.u32 %v132, %v147
    %v152 = vand.u32 %v133, %v147
    %v155 = vand.u32 %v134, %v147
    %v158 = vand.u32 %v135, %v147
    %160 = vmatprep.subr.bf16.mxu0 %v129
    %161 = vmatpush1.bf16.msra.mxu0 %v128
    %162 = vmatprep.subr.bf16.mxu0 %v152
    %163 = vmatpush1.bf16.msra.mxu0 %v149
    %164 = vmatprep.subr.bf16.mxu0 0
    %165 = vmatpush1.bf16.msra.mxu0 0
    %166 = vmatprep.subr.bf16.mxu0 0
    %167 = vmatpush1.bf16.msra.mxu0 0
    %168 = vmatprep.subr.bf16.mxu0 0
    %169 = vmatpush1.bf16.msra.mxu0 0
    %170 = vmatprep.subr.bf16.mxu0 0
    %171 = vmatpush1.bf16.msra.mxu0 0
    %172 = vmatprep.subr.bf16.mxu0 0
    %173 = vmatpush1.bf16.msra.mxu0 0
    %174 = vmatprep.subr.bf16.mxu0 0
    %175 = vmatpush1.bf16.msra.mxu0 0
    %176 = vmatprep.subr.bf16.mxu0 0
    %177 = vmatpush1.bf16.msra.mxu0 0
    %178 = vmatprep.subr.bf16.mxu0 0
    %179 = vmatpush1.bf16.msra.mxu0 0
    %180 = vmatprep.subr.bf16.mxu0 0
    %181 = vmatpush1.bf16.msra.mxu0 0
    %182 = vmatprep.subr.bf16.mxu0 0
    %183 = vmatpush1.bf16.msra.mxu0 0
    %184 = vmatprep.subr.bf16.mxu0 0
    %185 = vmatpush1.bf16.msra.mxu0 0
    %186 = vmatprep.subr.bf16.mxu0 0
    %187 = vmatpush1.bf16.msra.mxu0 0
    %188 = vmatprep.subr.bf16.mxu0 0
    %189 = vmatpush1.bf16.msra.mxu0 0
    %190 = vmatprep.subr.bf16.mxu0 0
    %191 = vmatpush1.bf16.msra.mxu0 0
    %192 = vmatprep.mubr.bf16.mxu0 0
    %193 = vmatmul.mubr.bf16.gmra.mrb[0].mxu0 %v142
    %v194 = vpop.f32.mrb[0].mxu0
    %v195 = vadd.f32 %v93, %v194
    %v196 = vpop.f32.mrb[0].mxu0
    %v197 = vadd.f32 %v97, %v196
    %v198 = vpop.f32.mrb[0].mxu0
    %v199 = vpop.f32.mrb[0].mxu0
    %200 = vdwg.mxu0
    %201 = vmatprep.subr.bf16.mxu0 %v131
    %202 = vmatpush1.bf16.msra.mxu0 %v130
    %203 = vmatprep.subr.bf16.mxu0 %v158
    %204 = vmatpush1.bf16.msra.mxu0 %v155
    %205 = vmatprep.subr.bf16.mxu0 0
    %206 = vmatpush1.bf16.msra.mxu0 0
    %207 = vmatprep.subr.bf16.mxu0 0
    %208 = vmatpush1.bf16.msra.mxu0 0
    %209 = vmatprep.subr.bf16.mxu0 0
    %210 = vmatpush1.bf16.msra.mxu0 0
    %211 = vmatprep.subr.bf16.mxu0 0
    %212 = vmatpush1.bf16.msra.mxu0 0
    %213 = vmatprep.subr.bf16.mxu0 0
    %214 = vmatpush1.bf16.msra.mxu0 0
    %215 = vmatprep.subr.bf16.mxu0 0
    %216 = vmatpush1.bf16.msra.mxu0 0
    %217 = vmatprep.subr.bf16.mxu0 0
    %218 = vmatpush1.bf16.msra.mxu0 0
    %219 = vmatprep.subr.bf16.mxu0 0
    %220 = vmatpush1.bf16.msra.mxu0 0
    %221 = vmatprep.subr.bf16.mxu0 0
    %222 = vmatpush1.bf16.msra.mxu0 0
    %223 = vmatprep.subr.bf16.mxu0 0
    %224 = vmatpush1.bf16.msra.mxu0 0
    %225 = vmatprep.subr.bf16.mxu0 0
    %226 = vmatpush1.bf16.msra.mxu0 0
    %227 = vmatprep.subr.bf16.mxu0 0
    %228 = vmatpush1.bf16.msra.mxu0 0
    %229 = vmatprep.subr.bf16.mxu0 0
    %230 = vmatpush1.bf16.msra.mxu0 0
    %231 = vmatprep.subr.bf16.mxu0 0
    %232 = vmatpush1.bf16.msra.mxu0 0
    %233 = vmatprep.mubr.bf16.mxu0 0
    %234 = vmatmul.mubr.bf16.gmra.mrb[0].mxu0 %v142
    %v235 = vpop.f32.mrb[0].mxu0
    %v236 = vadd.f32 %v101, %v235
    %v237 = vpop.f32.mrb[0].mxu0
    %v238 = vadd.f32 %v105, %v237
    %v239 = vpop.f32.mrb[0].mxu0
    %v240 = vpop.f32.mrb[0].mxu0
    %241 = vdwg.mxu0
    %v242 = vmax.f32 %v195, 0.0
    %v243 = vmax.f32 %v197, 0.0
    %v244 = vmax.f32 %v236, 0.0
    %v245 = vmax.f32 %v238, 0.0
    %v246 = vpack.c.bf16 %v242, %v242
    %v247 = vpack.c.bf16 %v243, %v243
    %v248 = vpack.c.bf16 %v244, %v244
    %v249 = vpack.c.bf16 %v245, %v245
    %v250 = vld [vmem:[#allocation7] sm:$0xff]
    %v251 = vld [vmem:[#allocation7 + $0x8] sm:$0xff]
    %v252 = vld [vmem:[#allocation7 + $0x10] sm:$0xff]
    %v253 = vld [vmem:[#allocation7 + $0x18] sm:$0xff]
    %v254 = vld [vmem:[#allocation7 + $0x20] sm:$0xff]
    %v255 = vld [vmem:[#allocation7 + $0x28] sm:$0xff]
    %v256 = vld [vmem:[#allocation7 + $0x30] sm:$0xff]
    %v257 = vld [vmem:[#allocation7 + $0x38] sm:$0xff]
    %v258 = vld [vmem:[#allocation7 + $0x40] sm:$0xff]
    %v259 = vld [vmem:[#allocation7 + $0x48] sm:$0xff]
    %v260 = vld [vmem:[#allocation7 + $0x50] sm:$0xff]
    %v261 = vld [vmem:[#allocation7 + $0x58] sm:$0xff]
    %v262 = vld [vmem:[#allocation7 + $0x60] sm:$0xff]
    %v263 = vld [vmem:[#allocation7 + $0x68] sm:$0xff]
    %v264 = vld [vmem:[#allocation7 + $0x70] sm:$0xff]
    %v265 = vld [vmem:[#allocation7 + $0x78] sm:$0xff]
    %v266 = vld [vmem:[#allocation7 + $0x80] sm:$0xff]
    %v267 = vld [vmem:[#allocation7 + $0x88] sm:$0xff]
    %v268 = vld [vmem:[#allocation7 + $0x90] sm:$0xff]
    %v269 = vld [vmem:[#allocation7 + $0x98] sm:$0xff]
    %v270 = vld [vmem:[#allocation7 + $0xa0] sm:$0xff]
    %v271 = vld [vmem:[#allocation7 + $0xa8] sm:$0xff]
    %v272 = vld [vmem:[#allocation7 + $0xb0] sm:$0xff]
    %v273 = vld [vmem:[#allocation7 + $0xb8] sm:$0xff]
    %v274 = vld [vmem:[#allocation7 + $0xc0] sm:$0xff]
    %v275 = vld [vmem:[#allocation7 + $0xc8] sm:$0xff]
    %v276 = vld [vmem:[#allocation7 + $0xd0] sm:$0xff]
    %v277 = vld [vmem:[#allocation7 + $0xd8] sm:$0xff]
    %v278 = vld [vmem:[#allocation7 + $0xe0] sm:$0xff]
    %v279 = vld [vmem:[#allocation7 + $0xe8] sm:$0xff]
    %v280 = vld [vmem:[#allocation7 + $0xf0] sm:$0xff]
    %v281 = vld [vmem:[#allocation7 + $0xf8] sm:$0xff]
    %v282 = vld [vmem:[#allocation7 + $0x100] sm:$0xff]
    %v283 = vld [vmem:[#allocation7 + $0x108] sm:$0xff]
    %v284 = vld [vmem:[#allocation7 + $0x110] sm:$0xff]
    %v285 = vld [vmem:[#allocation7 + $0x118] sm:$0xff]
    %v286 = vld [vmem:[#allocation7 + $0x120] sm:$0xff]
    %v287 = vld [vmem:[#allocation7 + $0x128] sm:$0xff]
    %v288 = vld [vmem:[#allocation7 + $0x130] sm:$0xff]
    %v289 = vld [vmem:[#allocation7 + $0x138] sm:$0xff]
    %v290 = vld [vmem:[#allocation7 + $0x140] sm:$0xff]
    %v291 = vld [vmem:[#allocation7 + $0x148] sm:$0xff]
    %v292 = vld [vmem:[#allocation7 + $0x150] sm:$0xff]
    %v293 = vld [vmem:[#allocation7 + $0x158] sm:$0xff]
    %v294 = vld [vmem:[#allocation7 + $0x160] sm:$0xff]
    %v295 = vld [vmem:[#allocation7 + $0x168] sm:$0xff]
    %v296 = vld [vmem:[#allocation7 + $0x170] sm:$0xff]
    %v297 = vld [vmem:[#allocation7 + $0x178] sm:$0xff]
    %v298 = vld [vmem:[#allocation7 + $0x180] sm:$0xff]
    %v299 = vld [vmem:[#allocation7 + $0x188] sm:$0xff]
    %v300 = vld [vmem:[#allocation7 + $0x190] sm:$0xff]
    %v301 = vld [vmem:[#allocation7 + $0x198] sm:$0xff]
    %v302 = vld [vmem:[#allocation7 + $0x1a0] sm:$0xff]
    %v303 = vld [vmem:[#allocation7 + $0x1a8] sm:$0xff]
    %v304 = vld [vmem:[#allocation7 + $0x1b0] sm:$0xff]
    %v305 = vld [vmem:[#allocation7 + $0x1b8] sm:$0xff]
    %v306 = vld [vmem:[#allocation7 + $0x1c0] sm:$0xff]
    %v307 = vld [vmem:[#allocation7 + $0x1c8] sm:$0xff]
    %v308 = vld [vmem:[#allocation7 + $0x1d0] sm:$0xff]
    %v309 = vld [vmem:[#allocation7 + $0x1d8] sm:$0xff]
    %v310 = vld [vmem:[#allocation7 + $0x1e0] sm:$0xff]
    %v311 = vld [vmem:[#allocation7 + $0x1e8] sm:$0xff]
    %v312 = vld [vmem:[#allocation7 + $0x1f0] sm:$0xff]
    %v313 = vld [vmem:[#allocation7 + $0x1f8] sm:$0xff]
    %v314 = vld [vmem:[#allocation7 + $0x200] sm:$0xff]
    %v315 = vld [vmem:[#allocation7 + $0x208] sm:$0xff]
    %v316 = vld [vmem:[#allocation7 + $0x210] sm:$0xff]
    %v317 = vld [vmem:[#allocation7 + $0x218] sm:$0xff]
    %v318 = vld [vmem:[#allocation7 + $0x220] sm:$0xff]
    %v319 = vld [vmem:[#allocation7 + $0x228] sm:$0xff]
    %v320 = vld [vmem:[#allocation7 + $0x230] sm:$0xff]
    %v321 = vld [vmem:[#allocation7 + $0x238] sm:$0xff]
    %v322 = vld [vmem:[#allocation7 + $0x240] sm:$0xff]
    %v323 = vld [vmem:[#allocation7 + $0x248] sm:$0xff]
    %v324 = vld [vmem:[#allocation7 + $0x250] sm:$0xff]
    %v325 = vld [vmem:[#allocation7 + $0x258] sm:$0xff]
    %v326 = vld [vmem:[#allocation7 + $0x260] sm:$0xff]
    %v327 = vld [vmem:[#allocation7 + $0x268] sm:$0xff]
    %v328 = vld [vmem:[#allocation7 + $0x270] sm:$0xff]
    %v329 = vld [vmem:[#allocation7 + $0x278] sm:$0xff]
    %v330 = vld [vmem:[#allocation7 + $0x280] sm:$0xff]
    %v331 = vld [vmem:[#allocation7 + $0x288] sm:$0xff]
    %v332 = vld [vmem:[#allocation7 + $0x290] sm:$0xff]
    %v333 = vld [vmem:[#allocation7 + $0x298] sm:$0xff]
    %v334 = vld [vmem:[#allocation7 + $0x2a0] sm:$0xff]
    %v335 = vld [vmem:[#allocation7 + $0x2a8] sm:$0xff]
    %v336 = vld [vmem:[#allocation7 + $0x2b0] sm:$0xff]
    %v337 = vld [vmem:[#allocation7 + $0x2b8] sm:$0xff]
    %v338 = vld [vmem:[#allocation7 + $0x2c0] sm:$0xff]
    %v339 = vld [vmem:[#allocation7 + $0x2c8] sm:$0xff]
    %v340 = vld [vmem:[#allocation7 + $0x2d0] sm:$0xff]
    %v341 = vld [vmem:[#allocation7 + $0x2d8] sm:$0xff]
    %v342 = vld [vmem:[#allocation7 + $0x2e0] sm:$0xff]
    %v343 = vld [vmem:[#allocation7 + $0x2e8] sm:$0xff]
    %v344 = vld [vmem:[#allocation7 + $0x2f0] sm:$0xff]
    %v345 = vld [vmem:[#allocation7 + $0x2f8] sm:$0xff]
    %v346 = vld [vmem:[#allocation7 + $0x300] sm:$0xff]
    %v347 = vld [vmem:[#allocation7 + $0x308] sm:$0xff]
    %v348 = vld [vmem:[#allocation7 + $0x310] sm:$0xff]
    %v349 = vld [vmem:[#allocation7 + $0x318] sm:$0xff]
    %v350 = vld [vmem:[#allocation7 + $0x320] sm:$0xff]
    %v351 = vld [vmem:[#allocation7 + $0x328] sm:$0xff]
    %v352 = vld [vmem:[#allocation7 + $0x330] sm:$0xff]
    %v353 = vld [vmem:[#allocation7 + $0x338] sm:$0xff]
    %v354 = vld [vmem:[#allocation7 + $0x340] sm:$0xff]
    %v355 = vld [vmem:[#allocation7 + $0x348] sm:$0xff]
    %v356 = vld [vmem:[#allocation7 + $0x350] sm:$0xff]
    %v357 = vld [vmem:[#allocation7 + $0x358] sm:$0xff]
    %v358 = vld [vmem:[#allocation7 + $0x360] sm:$0xff]
    %v359 = vld [vmem:[#allocation7 + $0x368] sm:$0xff]
    %v360 = vld [vmem:[#allocation7 + $0x370] sm:$0xff]
    %v361 = vld [vmem:[#allocation7 + $0x378] sm:$0xff]
    %v362 = vld [vmem:[#allocation7 + $0x380] sm:$0xff]
    %v363 = vld [vmem:[#allocation7 + $0x388] sm:$0xff]
    %v364 = vld [vmem:[#allocation7 + $0x390] sm:$0xff]
    %v365 = vld [vmem:[#allocation7 + $0x398] sm:$0xff]
    %v366 = vld [vmem:[#allocation7 + $0x3a0] sm:$0xff]
    %v367 = vld [vmem:[#allocation7 + $0x3a8] sm:$0xff]
    %v368 = vld [vmem:[#allocation7 + $0x3b0] sm:$0xff]
    %v369 = vld [vmem:[#allocation7 + $0x3b8] sm:$0xff]
    %v370 = vld [vmem:[#allocation7 + $0x3c0] sm:$0xff]
    %v371 = vld [vmem:[#allocation7 + $0x3c8] sm:$0xff]
    %v372 = vld [vmem:[#allocation7 + $0x3d0] sm:$0xff]
    %v373 = vld [vmem:[#allocation7 + $0x3d8] sm:$0xff]
    %v374 = vld [vmem:[#allocation7 + $0x3e0] sm:$0xff]
    %v375 = vld [vmem:[#allocation7 + $0x3e8] sm:$0xff]
    %v376 = vld [vmem:[#allocation7 + $0x3f0] sm:$0xff]
    %v377 = vld [vmem:[#allocation7 + $0x3f8] sm:$0xff]
    %v378 = vld [vmem:[%s4] sm:$0xf]
    %v380 = vlaneseq
    %v381 = vshrl.u32 %v380, 7
    %v382 = vsub.s32 0, %v381
    %v383 = vrot.slane %v378, %v382
    %v384 = vlaneseq
    %v385 = vshrl.u32 %v384, 7
    %v386 = vsub.s32 1, %v385
    %v387 = vrot.slane %v378, %v386
    %v388 = vlaneseq
    %v389 = vshrl.u32 %v388, 7
    %v390 = vsub.s32 2, %v389
    %v391 = vrot.slane %v378, %v390
    %v392 = vlaneseq
    %v393 = vshrl.u32 %v392, 7
    %v394 = vsub.s32 3, %v393
    %v395 = vrot.slane %v378, %v394
    %v528 = vunpack.c.l.b16 %v250
    %v529 = vunpack.c.h.b16 %v250
    %v530 = vunpack.c.l.b16 %v251
    %v531 = vunpack.c.h.b16 %v251
    %v532 = vunpack.c.l.b16 %v252
    %v533 = vunpack.c.h.b16 %v252
    %v534 = vunpack.c.l.b16 %v253
    %v535 = vunpack.c.h.b16 %v253
    %v536 = vunpack.c.l.b16 %v254
    %v537 = vunpack.c.h.b16 %v254
    %v538 = vunpack.c.l.b16 %v255
    %v539 = vunpack.c.h.b16 %v255
    %v540 = vunpack.c.l.b16 %v256
    %v541 = vunpack.c.h.b16 %v256
    %v542 = vunpack.c.l.b16 %v257
    %v543 = vunpack.c.h.b16 %v257
    %v544 = vunpack.c.l.b16 %v258
    %v545 = vunpack.c.h.b16 %v258
    %v546 = vunpack.c.l.b16 %v259
    %v547 = vunpack.c.h.b16 %v259
    %v548 = vunpack.c.l.b16 %v260
    %v549 = vunpack.c.h.b16 %v260
    %v550 = vunpack.c.l.b16 %v261
    %v551 = vunpack.c.h.b16 %v261
    %v552 = vunpack.c.l.b16 %v262
    %v553 = vunpack.c.h.b16 %v262
    %v554 = vunpack.c.l.b16 %v263
    %v555 = vunpack.c.h.b16 %v263
    %v556 = vunpack.c.l.b16 %v264
    %v557 = vunpack.c.h.b16 %v264
    %v558 = vunpack.c.l.b16 %v265
    %v559 = vunpack.c.h.b16 %v265
    %v560 = vunpack.c.l.b16 %v266
    %v561 = vunpack.c.h.b16 %v266
    %v562 = vunpack.c.l.b16 %v267
    %v563 = vunpack.c.h.b16 %v267
    %v564 = vunpack.c.l.b16 %v268
    %v565 = vunpack.c.h.b16 %v268
    %v566 = vunpack.c.l.b16 %v269
    %v567 = vunpack.c.h.b16 %v269
    %v568 = vunpack.c.l.b16 %v270
    %v569 = vunpack.c.h.b16 %v270
    %v570 = vunpack.c.l.b16 %v271
    %v571 = vunpack.c.h.b16 %v271
    %v572 = vunpack.c.l.b16 %v272
    %v573 = vunpack.c.h.b16 %v272
    %v574 = vunpack.c.l.b16 %v273
    %v575 = vunpack.c.h.b16 %v273
    %v576 = vunpack.c.l.b16 %v274
    %v577 = vunpack.c.h.b16 %v274
    %v578 = vunpack.c.l.b16 %v275
    %v579 = vunpack.c.h.b16 %v275
    %v580 = vunpack.c.l.b16 %v276
    %v581 = vunpack.c.h.b16 %v276
    %v582 = vunpack.c.l.b16 %v277
    %v583 = vunpack.c.h.b16 %v277
    %v584 = vunpack.c.l.b16 %v278
    %v585 = vunpack.c.h.b16 %v278
    %v586 = vunpack.c.l.b16 %v279
    %v587 = vunpack.c.h.b16 %v279
    %v588 = vunpack.c.l.b16 %v280
    %v589 = vunpack.c.h.b16 %v280
    %v590 = vunpack.c.l.b16 %v281
    %v591 = vunpack.c.h.b16 %v281
    %v592 = vunpack.c.l.b16 %v282
    %v593 = vunpack.c.h.b16 %v282
    %v594 = vunpack.c.l.b16 %v283
    %v595 = vunpack.c.h.b16 %v283
    %v596 = vunpack.c.l.b16 %v284
    %v597 = vunpack.c.h.b16 %v284
    %v598 = vunpack.c.l.b16 %v285
    %v599 = vunpack.c.h.b16 %v285
    %v600 = vunpack.c.l.b16 %v286
    %v601 = vunpack.c.h.b16 %v286
    %v602 = vunpack.c.l.b16 %v287
    %v603 = vunpack.c.h.b16 %v287
    %v604 = vunpack.c.l.b16 %v288
    %v605 = vunpack.c.h.b16 %v288
    %v606 = vunpack.c.l.b16 %v289
    %v607 = vunpack.c.h.b16 %v289
    %v608 = vunpack.c.l.b16 %v290
    %v609 = vunpack.c.h.b16 %v290
    %v610 = vunpack.c.l.b16 %v291
    %v611 = vunpack.c.h.b16 %v291
    %v612 = vunpack.c.l.b16 %v292
    %v613 = vunpack.c.h.b16 %v292
    %v614 = vunpack.c.l.b16 %v293
    %v615 = vunpack.c.h.b16 %v293
    %v616 = vunpack.c.l.b16 %v294
    %v617 = vunpack.c.h.b16 %v294
    %v618 = vunpack.c.l.b16 %v295
    %v619 = vunpack.c.h.b16 %v295
    %v620 = vunpack.c.l.b16 %v296
    %v621 = vunpack.c.h.b16 %v296
    %v622 = vunpack.c.l.b16 %v297
    %v623 = vunpack.c.h.b16 %v297
    %v624 = vunpack.c.l.b16 %v298
    %v625 = vunpack.c.h.b16 %v298
    %v626 = vunpack.c.l.b16 %v299
    %v627 = vunpack.c.h.b16 %v299
    %v628 = vunpack.c.l.b16 %v300
    %v629 = vunpack.c.h.b16 %v300
    %v630 = vunpack.c.l.b16 %v301
    %v631 = vunpack.c.h.b16 %v301
    %v632 = vunpack.c.l.b16 %v302
    %v633 = vunpack.c.h.b16 %v302
    %v634 = vunpack.c.l.b16 %v303
    %v635 = vunpack.c.h.b16 %v303
    %v636 = vunpack.c.l.b16 %v304
    %v637 = vunpack.c.h.b16 %v304
    %v638 = vunpack.c.l.b16 %v305
    %v639 = vunpack.c.h.b16 %v305
    %v640 = vunpack.c.l.b16 %v306
    %v641 = vunpack.c.h.b16 %v306
    %v642 = vunpack.c.l.b16 %v307
    %v643 = vunpack.c.h.b16 %v307
    %v644 = vunpack.c.l.b16 %v308
    %v645 = vunpack.c.h.b16 %v308
    %v646 = vunpack.c.l.b16 %v309
    %v647 = vunpack.c.h.b16 %v309
    %v648 = vunpack.c.l.b16 %v310
    %v649 = vunpack.c.h.b16 %v310
    %v650 = vunpack.c.l.b16 %v311
    %v651 = vunpack.c.h.b16 %v311
    %v652 = vunpack.c.l.b16 %v312
    %v653 = vunpack.c.h.b16 %v312
    %v654 = vunpack.c.l.b16 %v313
    %v655 = vunpack.c.h.b16 %v313
    %v656 = vunpack.c.l.b16 %v314
    %v657 = vunpack.c.h.b16 %v314
    %v658 = vunpack.c.l.b16 %v315
    %v659 = vunpack.c.h.b16 %v315
    %v660 = vunpack.c.l.b16 %v316
    %v661 = vunpack.c.h.b16 %v316
    %v662 = vunpack.c.l.b16 %v317
    %v663 = vunpack.c.h.b16 %v317
    %v664 = vunpack.c.l.b16 %v318
    %v665 = vunpack.c.h.b16 %v318
    %v666 = vunpack.c.l.b16 %v319
    %v667 = vunpack.c.h.b16 %v319
    %v668 = vunpack.c.l.b16 %v320
    %v669 = vunpack.c.h.b16 %v320
    %v670 = vunpack.c.l.b16 %v321
    %v671 = vunpack.c.h.b16 %v321
    %v672 = vunpack.c.l.b16 %v322
    %v673 = vunpack.c.h.b16 %v322
    %v674 = vunpack.c.l.b16 %v323
    %v675 = vunpack.c.h.b16 %v323
    %v676 = vunpack.c.l.b16 %v324
    %v677 = vunpack.c.h.b16 %v324
    %v678 = vunpack.c.l.b16 %v325
    %v679 = vunpack.c.h.b16 %v325
    %v680 = vunpack.c.l.b16 %v326
    %v681 = vunpack.c.h.b16 %v326
    %v682 = vunpack.c.l.b16 %v327
    %v683 = vunpack.c.h.b16 %v327
    %v684 = vunpack.c.l.b16 %v328
    %v685 = vunpack.c.h.b16 %v328
    %v686 = vunpack.c.l.b16 %v329
    %v687 = vunpack.c.h.b16 %v329
    %v688 = vunpack.c.l.b16 %v330
    %v689 = vunpack.c.h.b16 %v330
    %v690 = vunpack.c.l.b16 %v331
    %v691 = vunpack.c.h.b16 %v331
    %v692 = vunpack.c.l.b16 %v332
    %v693 = vunpack.c.h.b16 %v332
    %v694 = vunpack.c.l.b16 %v333
    %v695 = vunpack.c.h.b16 %v333
    %v696 = vunpack.c.l.b16 %v334
    %v697 = vunpack.c.h.b16 %v334
    %v698 = vunpack.c.l.b16 %v335
    %v699 = vunpack.c.h.b16 %v335
    %v700 = vunpack.c.l.b16 %v336
    %v701 = vunpack.c.h.b16 %v336
    %v702 = vunpack.c.l.b16 %v337
    %v703 = vunpack.c.h.b16 %v337
    %v704 = vunpack.c.l.b16 %v338
    %v705 = vunpack.c.h.b16 %v338
    %v706 = vunpack.c.l.b16 %v339
    %v707 = vunpack.c.h.b16 %v339
    %v708 = vunpack.c.l.b16 %v340
    %v709 = vunpack.c.h.b16 %v340
    %v710 = vunpack.c.l.b16 %v341
    %v711 = vunpack.c.h.b16 %v341
    %v712 = vunpack.c.l.b16 %v342
    %v713 = vunpack.c.h.b16 %v342
    %v714 = vunpack.c.l.b16 %v343
    %v715 = vunpack.c.h.b16 %v343
    %v716 = vunpack.c.l.b16 %v344
    %v717 = vunpack.c.h.b16 %v344
    %v718 = vunpack.c.l.b16 %v345
    %v719 = vunpack.c.h.b16 %v345
    %v720 = vunpack.c.l.b16 %v346
    %v721 = vunpack.c.h.b16 %v346
    %v722 = vunpack.c.l.b16 %v347
    %v723 = vunpack.c.h.b16 %v347
    %v724 = vunpack.c.l.b16 %v348
    %v725 = vunpack.c.h.b16 %v348
    %v726 = vunpack.c.l.b16 %v349
    %v727 = vunpack.c.h.b16 %v349
    %v728 = vunpack.c.l.b16 %v350
    %v729 = vunpack.c.h.b16 %v350
    %v730 = vunpack.c.l.b16 %v351
    %v731 = vunpack.c.h.b16 %v351
    %v732 = vunpack.c.l.b16 %v352
    %v733 = vunpack.c.h.b16 %v352
    %v734 = vunpack.c.l.b16 %v353
    %v735 = vunpack.c.h.b16 %v353
    %v736 = vunpack.c.l.b16 %v354
    %v737 = vunpack.c.h.b16 %v354
    %v738 = vunpack.c.l.b16 %v355
    %v739 = vunpack.c.h.b16 %v355
    %v740 = vunpack.c.l.b16 %v356
    %v741 = vunpack.c.h.b16 %v356
    %v742 = vunpack.c.l.b16 %v357
    %v743 = vunpack.c.h.b16 %v357
    %v744 = vunpack.c.l.b16 %v358
    %v745 = vunpack.c.h.b16 %v358
    %v746 = vunpack.c.l.b16 %v359
    %v747 = vunpack.c.h.b16 %v359
    %v748 = vunpack.c.l.b16 %v360
    %v749 = vunpack.c.h.b16 %v360
    %v750 = vunpack.c.l.b16 %v361
    %v751 = vunpack.c.h.b16 %v361
    %v752 = vunpack.c.l.b16 %v362
    %v753 = vunpack.c.h.b16 %v362
    %v754 = vunpack.c.l.b16 %v363
    %v755 = vunpack.c.h.b16 %v363
    %v756 = vunpack.c.l.b16 %v364
    %v757 = vunpack.c.h.b16 %v364
    %v758 = vunpack.c.l.b16 %v365
    %v759 = vunpack.c.h.b16 %v365
    %v760 = vunpack.c.l.b16 %v366
    %v761 = vunpack.c.h.b16 %v366
    %v762 = vunpack.c.l.b16 %v367
    %v763 = vunpack.c.h.b16 %v367
    %v764 = vunpack.c.l.b16 %v368
    %v765 = vunpack.c.h.b16 %v368
    %v766 = vunpack.c.l.b16 %v369
    %v767 = vunpack.c.h.b16 %v369
    %v768 = vunpack.c.l.b16 %v370
    %v769 = vunpack.c.h.b16 %v370
    %v770 = vunpack.c.l.b16 %v371
    %v771 = vunpack.c.h.b16 %v371
    %v772 = vunpack.c.l.b16 %v372
    %v773 = vunpack.c.h.b16 %v372
    %v774 = vunpack.c.l.b16 %v373
    %v775 = vunpack.c.h.b16 %v373
    %v776 = vunpack.c.l.b16 %v374
    %v777 = vunpack.c.h.b16 %v374
    %v778 = vunpack.c.l.b16 %v375
    %v779 = vunpack.c.h.b16 %v375
    %v780 = vunpack.c.l.b16 %v376
    %v781 = vunpack.c.h.b16 %v376
    %v782 = vunpack.c.l.b16 %v377
    %v783 = vunpack.c.h.b16 %v377
    %v784 = vpack.c.b16 %v532, %v528
    %v785 = vpack.c.b16 %v533, %v529
    %v786 = vpack.c.b16 %v534, %v530
    %v787 = vpack.c.b16 %v535, %v531
    %v788 = vpack.c.b16 %v540, %v536
    %v789 = vpack.c.b16 %v541, %v537
    %v790 = vpack.c.b16 %v542, %v538
    %v791 = vpack.c.b16 %v543, %v539
    %v792 = vpack.c.b16 %v548, %v544
    %v793 = vpack.c.b16 %v549, %v545
    %v794 = vpack.c.b16 %v550, %v546
    %v795 = vpack.c.b16 %v551, %v547
    %v796 = vpack.c.b16 %v556, %v552
    %v797 = vpack.c.b16 %v557, %v553
    %v798 = vpack.c.b16 %v558, %v554
    %v799 = vpack.c.b16 %v559, %v555
    %v800 = vpack.c.b16 %v564, %v560
    %v801 = vpack.c.b16 %v565, %v561
    %v802 = vpack.c.b16 %v566, %v562
    %v803 = vpack.c.b16 %v567, %v563
    %v804 = vpack.c.b16 %v572, %v568
    %v805 = vpack.c.b16 %v573, %v569
    %v806 = vpack.c.b16 %v574, %v570
    %v807 = vpack.c.b16 %v575, %v571
    %v808 = vpack.c.b16 %v580, %v576
    %v809 = vpack.c.b16 %v581, %v577
    %v810 = vpack.c.b16 %v582, %v578
    %v811 = vpack.c.b16 %v583, %v579
    %v812 = vpack.c.b16 %v588, %v584
    %v813 = vpack.c.b16 %v589, %v585
    %v814 = vpack.c.b16 %v590, %v586
    %v815 = vpack.c.b16 %v591, %v587
    %v816 = vpack.c.b16 %v596, %v592
    %v817 = vpack.c.b16 %v597, %v593
    %v818 = vpack.c.b16 %v598, %v594
    %v819 = vpack.c.b16 %v599, %v595
    %v820 = vpack.c.b16 %v604, %v600
    %v821 = vpack.c.b16 %v605, %v601
    %v822 = vpack.c.b16 %v606, %v602
    %v823 = vpack.c.b16 %v607, %v603
    %v824 = vpack.c.b16 %v612, %v608
    %v825 = vpack.c.b16 %v613, %v609
    %v826 = vpack.c.b16 %v614, %v610
    %v827 = vpack.c.b16 %v615, %v611
    %v828 = vpack.c.b16 %v620, %v616
    %v829 = vpack.c.b16 %v621, %v617
    %v830 = vpack.c.b16 %v622, %v618
    %v831 = vpack.c.b16 %v623, %v619
    %v832 = vpack.c.b16 %v628, %v624
    %v833 = vpack.c.b16 %v629, %v625
    %v834 = vpack.c.b16 %v630, %v626
    %v835 = vpack.c.b16 %v631, %v627
    %v836 = vpack.c.b16 %v636, %v632
    %v837 = vpack.c.b16 %v637, %v633
    %v838 = vpack.c.b16 %v638, %v634
    %v839 = vpack.c.b16 %v639, %v635
    %v840 = vpack.c.b16 %v644, %v640
    %v841 = vpack.c.b16 %v645, %v641
    %v842 = vpack.c.b16 %v646, %v642
    %v843 = vpack.c.b16 %v647, %v643
    %v844 = vpack.c.b16 %v652, %v648
    %v845 = vpack.c.b16 %v653, %v649
    %v846 = vpack.c.b16 %v654, %v650
    %v847 = vpack.c.b16 %v655, %v651
    %v848 = vpack.c.b16 %v660, %v656
    %v849 = vpack.c.b16 %v661, %v657
    %v850 = vpack.c.b16 %v662, %v658
    %v851 = vpack.c.b16 %v663, %v659
    %v852 = vpack.c.b16 %v668, %v664
    %v853 = vpack.c.b16 %v669, %v665
    %v854 = vpack.c.b16 %v670, %v666
    %v855 = vpack.c.b16 %v671, %v667
    %v856 = vpack.c.b16 %v676, %v672
    %v857 = vpack.c.b16 %v677, %v673
    %v858 = vpack.c.b16 %v678, %v674
    %v859 = vpack.c.b16 %v679, %v675
    %v860 = vpack.c.b16 %v684, %v680
    %v861 = vpack.c.b16 %v685, %v681
    %v862 = vpack.c.b16 %v686, %v682
    %v863 = vpack.c.b16 %v687, %v683
    %v864 = vpack.c.b16 %v692, %v688
    %v865 = vpack.c.b16 %v693, %v689
    %v866 = vpack.c.b16 %v694, %v690
    %v867 = vpack.c.b16 %v695, %v691
    %v868 = vpack.c.b16 %v700, %v696
    %v869 = vpack.c.b16 %v701, %v697
    %v870 = vpack.c.b16 %v702, %v698
    %v871 = vpack.c.b16 %v703, %v699
    %v872 = vpack.c.b16 %v708, %v704
    %v873 = vpack.c.b16 %v709, %v705
    %v874 = vpack.c.b16 %v710, %v706
    %v875 = vpack.c.b16 %v711, %v707
    %v876 = vpack.c.b16 %v716, %v712
    %v877 = vpack.c.b16 %v717, %v713
    %v878 = vpack.c.b16 %v718, %v714
    %v879 = vpack.c.b16 %v719, %v715
    %v880 = vpack.c.b16 %v724, %v720
    %v881 = vpack.c.b16 %v725, %v721
    %v882 = vpack.c.b16 %v726, %v722
    %v883 = vpack.c.b16 %v727, %v723
    %v884 = vpack.c.b16 %v732, %v728
    %v885 = vpack.c.b16 %v733, %v729
    %v886 = vpack.c.b16 %v734, %v730
    %v887 = vpack.c.b16 %v735, %v731
    %v888 = vpack.c.b16 %v740, %v736
    %v889 = vpack.c.b16 %v741, %v737
    %v890 = vpack.c.b16 %v742, %v738
    %v891 = vpack.c.b16 %v743, %v739
    %v892 = vpack.c.b16 %v748, %v744
    %v893 = vpack.c.b16 %v749, %v745
    %v894 = vpack.c.b16 %v750, %v746
    %v895 = vpack.c.b16 %v751, %v747
    %v896 = vpack.c.b16 %v756, %v752
    %v897 = vpack.c.b16 %v757, %v753
    %v898 = vpack.c.b16 %v758, %v754
    %v899 = vpack.c.b16 %v759, %v755
    %v900 = vpack.c.b16 %v764, %v760
    %v901 = vpack.c.b16 %v765, %v761
    %v902 = vpack.c.b16 %v766, %v762
    %v903 = vpack.c.b16 %v767, %v763
    %v904 = vpack.c.b16 %v772, %v768
    %v905 = vpack.c.b16 %v773, %v769
    %v906 = vpack.c.b16 %v774, %v770
    %v907 = vpack.c.b16 %v775, %v771
    %v908 = vpack.c.b16 %v780, %v776
    %v909 = vpack.c.b16 %v781, %v777
    %v910 = vpack.c.b16 %v782, %v778
    %v911 = vpack.c.b16 %v783, %v779
    %1040 = vmatprep.subr.bf16.mxu0 %v785
    %1041 = vmatpush1.bf16.msra.mxu0 %v784
    %1042 = vmatprep.subr.bf16.mxu0 %v789
    %1043 = vmatpush1.bf16.msra.mxu0 %v788
    %1044 = vmatprep.subr.bf16.mxu0 %v793
    %1045 = vmatpush1.bf16.msra.mxu0 %v792
    %1046 = vmatprep.subr.bf16.mxu0 %v797
    %1047 = vmatpush1.bf16.msra.mxu0 %v796
    %1048 = vmatprep.subr.bf16.mxu0 %v801
    %1049 = vmatpush1.bf16.msra.mxu0 %v800
    %1050 = vmatprep.subr.bf16.mxu0 %v805
    %1051 = vmatpush1.bf16.msra.mxu0 %v804
    %1052 = vmatprep.subr.bf16.mxu0 %v809
    %1053 = vmatpush1.bf16.msra.mxu0 %v808
    %1054 = vmatprep.subr.bf16.mxu0 %v813
    %1055 = vmatpush1.bf16.msra.mxu0 %v812
    %1056 = vmatprep.subr.bf16.mxu0 %v817
    %1057 = vmatpush1.bf16.msra.mxu0 %v816
    %1058 = vmatprep.subr.bf16.mxu0 %v821
    %1059 = vmatpush1.bf16.msra.mxu0 %v820
    %1060 = vmatprep.subr.bf16.mxu0 %v825
    %1061 = vmatpush1.bf16.msra.mxu0 %v824
    %1062 = vmatprep.subr.bf16.mxu0 %v829
    %1063 = vmatpush1.bf16.msra.mxu0 %v828
    %1064 = vmatprep.subr.bf16.mxu0 %v833
    %1065 = vmatpush1.bf16.msra.mxu0 %v832
    %1066 = vmatprep.subr.bf16.mxu0 %v837
    %1067 = vmatpush1.bf16.msra.mxu0 %v836
    %1068 = vmatprep.subr.bf16.mxu0 %v841
    %1069 = vmatpush1.bf16.msra.mxu0 %v840
    %1070 = vmatprep.subr.bf16.mxu0 %v845
    %1071 = vmatpush1.bf16.msra.mxu0 %v844
    %1072 = vmatprep.mubr.bf16.mxu0 %v247
    %1073 = vmatmul.mubr.bf16.gmra.mrb[0].mxu0 %v246
    %v1074 = vpop.f32.mrb[0].mxu0
    %v1075 = vadd.f32 %v383, %v1074
    %v1076 = vpop.f32.mrb[0].mxu0
    %v1077 = vadd.f32 %v387, %v1076
    %v1078 = vpop.f32.mrb[0].mxu0
    %v1079 = vpop.f32.mrb[0].mxu0
    %1080 = vdwg.mxu0
    %1081 = vmatprep.subr.bf16.mxu0 %v849
    %1082 = vmatpush1.bf16.msra.mxu0 %v848
    %1083 = vmatprep.subr.bf16.mxu0 %v853
    %1084 = vmatpush1.bf16.msra.mxu0 %v852
    %1085 = vmatprep.subr.bf16.mxu0 %v857
    %1086 = vmatpush1.bf16.msra.mxu0 %v856
    %1087 = vmatprep.subr.bf16.mxu0 %v861
    %1088 = vmatpush1.bf16.msra.mxu0 %v860
    %1089 = vmatprep.subr.bf16.mxu0 %v865
    %1090 = vmatpush1.bf16.msra.mxu0 %v864
    %1091 = vmatprep.subr.bf16.mxu0 %v869
    %1092 = vmatpush1.bf16.msra.mxu0 %v868
    %1093 = vmatprep.subr.bf16.mxu0 %v873
    %1094 = vmatpush1.bf16.msra.mxu0 %v872
    %1095 = vmatprep.subr.bf16.mxu0 %v877
    %1096 = vmatpush1.bf16.msra.mxu0 %v876
    %1097 = vmatprep.subr.bf16.mxu0 %v881
    %1098 = vmatpush1.bf16.msra.mxu0 %v880
    %1099 = vmatprep.subr.bf16.mxu0 %v885
    %1100 = vmatpush1.bf16.msra.mxu0 %v884
    %1101 = vmatprep.subr.bf16.mxu0 %v889
    %1102 = vmatpush1.bf16.msra.mxu0 %v888
    %1103 = vmatprep.subr.bf16.mxu0 %v893
    %1104 = vmatpush1.bf16.msra.mxu0 %v892
    %1105 = vmatprep.subr.bf16.mxu0 %v897
    %1106 = vmatpush1.bf16.msra.mxu0 %v896
    %1107 = vmatprep.subr.bf16.mxu0 %v901
    %1108 = vmatpush1.bf16.msra.mxu0 %v900
    %1109 = vmatprep.subr.bf16.mxu0 %v905
    %1110 = vmatpush1.bf16.msra.mxu0 %v904
    %1111 = vmatprep.subr.bf16.mxu0 %v909
    %1112 = vmatpush1.bf16.msra.mxu0 %v908
    %1113 = vmatprep.mubr.bf16.mxu0 %v249
    %1114 = vmatmul.mubr.bf16.gmra.mrb[0].mxu0 %v248
    %v1115 = vpop.f32.mrb[0].mxu0
    %v1116 = vadd.f32 %v1075, %v1115
    %v1117 = vpop.f32.mrb[0].mxu0
    %v1118 = vadd.f32 %v1077, %v1117
    %v1119 = vpop.f32.mrb[0].mxu0
    %v1120 = vpop.f32.mrb[0].mxu0
    %1121 = vdwg.mxu0
    %1122 = vmatprep.subr.bf16.mxu0 %v787
    %1123 = vmatpush1.bf16.msra.mxu0 %v786
    %1124 = vmatprep.subr.bf16.mxu0 %v791
    %1125 = vmatpush1.bf16.msra.mxu0 %v790
    %1126 = vmatprep.subr.bf16.mxu0 %v795
    %1127 = vmatpush1.bf16.msra.mxu0 %v794
    %1128 = vmatprep.subr.bf16.mxu0 %v799
    %1129 = vmatpush1.bf16.msra.mxu0 %v798
    %1130 = vmatprep.subr.bf16.mxu0 %v803
    %1131 = vmatpush1.bf16.msra.mxu0 %v802
    %1132 = vmatprep.subr.bf16.mxu0 %v807
    %1133 = vmatpush1.bf16.msra.mxu0 %v806
    %1134 = vmatprep.subr.bf16.mxu0 %v811
    %1135 = vmatpush1.bf16.msra.mxu0 %v810
    %1136 = vmatprep.subr.bf16.mxu0 %v815
    %1137 = vmatpush1.bf16.msra.mxu0 %v814
    %1138 = vmatprep.subr.bf16.mxu0 %v819
    %1139 = vmatpush1.bf16.msra.mxu0 %v818
    %1140 = vmatprep.subr.bf16.mxu0 %v823
    %1141 = vmatpush1.bf16.msra.mxu0 %v822
    %1142 = vmatprep.subr.bf16.mxu0 %v827
    %1143 = vmatpush1.bf16.msra.mxu0 %v826
    %1144 = vmatprep.subr.bf16.mxu0 %v831
    %1145 = vmatpush1.bf16.msra.mxu0 %v830
    %1146 = vmatprep.subr.bf16.mxu0 %v835
    %1147 = vmatpush1.bf16.msra.mxu0 %v834
    %1148 = vmatprep.subr.bf16.mxu0 %v839
    %1149 = vmatpush1.bf16.msra.mxu0 %v838
    %1150 = vmatprep.subr.bf16.mxu0 %v843
    %1151 = vmatpush1.bf16.msra.mxu0 %v842
    %1152 = vmatprep.subr.bf16.mxu0 %v847
    %1153 = vmatpush1.bf16.msra.mxu0 %v846
    %1154 = vmatprep.mubr.bf16.mxu0 %v247
    %1155 = vmatmul.mubr.bf16.gmra.mrb[0].mxu0 %v246
    %v1156 = vpop.f32.mrb[0].mxu0
    %v1157 = vadd.f32 %v391, %v1156
    %v1158 = vpop.f32.mrb[0].mxu0
    %v1159 = vadd.f32 %v395, %v1158
    %v1160 = vpop.f32.mrb[0].mxu0
    %v1161 = vpop.f32.mrb[0].mxu0
    %1162 = vdwg.mxu0
    %1163 = vmatprep.subr.bf16.mxu0 %v851
    %1164 = vmatpush1.bf16.msra.mxu0 %v850
    %1165 = vmatprep.subr.bf16.mxu0 %v855
    %1166 = vmatpush1.bf16.msra.mxu0 %v854
    %1167 = vmatprep.subr.bf16.mxu0 %v859
    %1168 = vmatpush1.bf16.msra.mxu0 %v858
    %1169 = vmatprep.subr.bf16.mxu0 %v863
    %1170 = vmatpush1.bf16.msra.mxu0 %v862
    %1171 = vmatprep.subr.bf16.mxu0 %v867
    %1172 = vmatpush1.bf16.msra.mxu0 %v866
    %1173 = vmatprep.subr.bf16.mxu0 %v871
    %1174 = vmatpush1.bf16.msra.mxu0 %v870
    %1175 = vmatprep.subr.bf16.mxu0 %v875
    %1176 = vmatpush1.bf16.msra.mxu0 %v874
    %1177 = vmatprep.subr.bf16.mxu0 %v879
    %1178 = vmatpush1.bf16.msra.mxu0 %v878
    %1179 = vmatprep.subr.bf16.mxu0 %v883
    %1180 = vmatpush1.bf16.msra.mxu0 %v882
    %1181 = vmatprep.subr.bf16.mxu0 %v887
    %1182 = vmatpush1.bf16.msra.mxu0 %v886
    %1183 = vmatprep.subr.bf16.mxu0 %v891
    %1184 = vmatpush1.bf16.msra.mxu0 %v890
    %1185 = vmatprep.subr.bf16.mxu0 %v895
    %1186 = vmatpush1.bf16.msra.mxu0 %v894
    %1187 = vmatprep.subr.bf16.mxu0 %v899
    %1188 = vmatpush1.bf16.msra.mxu0 %v898
    %1189 = vmatprep.subr.bf16.mxu0 %v903
    %1190 = vmatpush1.bf16.msra.mxu0 %v902
    %1191 = vmatprep.subr.bf16.mxu0 %v907
    %1192 = vmatpush1.bf16.msra.mxu0 %v906
    %1193 = vmatprep.subr.bf16.mxu0 %v911
    %1194 = vmatpush1.bf16.msra.mxu0 %v910
    %1195 = vmatprep.mubr.bf16.mxu0 %v249
    %1196 = vmatmul.mubr.bf16.gmra.mrb[0].mxu0 %v248
    %v1197 = vpop.f32.mrb[0].mxu0
    %v1198 = vadd.f32 %v1157, %v1197
    %v1199 = vpop.f32.mrb[0].mxu0
    %v1200 = vadd.f32 %v1159, %v1199
    %v1201 = vpop.f32.mrb[0].mxu0
    %v1202 = vpop.f32.mrb[0].mxu0
    %1203 = vdwg.mxu0
    %v1204 = vmax.f32 %v1116, 0.0
    %v1205 = vmax.f32 %v1118, 0.0
    %v1206 = vmax.f32 %v1198, 0.0
    %v1207 = vmax.f32 %v1200, 0.0
    %v1208 = vpack.c.bf16 %v1204, %v1204
    %v1209 = vpack.c.bf16 %v1205, %v1205
    %v1210 = vpack.c.bf16 %v1206, %v1206
    %v1211 = vpack.c.bf16 %v1207, %v1207
    %v1212 = vld [vmem:[#allocation8] sm:$0xf]
    %v1213 = vld [vmem:[#allocation8 + $0x4] sm:$0xf]
    %v1214 = vld [vmem:[#allocation8 + $0x8] sm:$0xf]
    %v1215 = vld [vmem:[#allocation8 + $0xc] sm:$0xf]
    %v1216 = vld [vmem:[#allocation8 + $0x10] sm:$0xf]
    %v1217 = vld [vmem:[#allocation8 + $0x14] sm:$0xf]
    %v1218 = vld [vmem:[#allocation8 + $0x18] sm:$0xf]
    %v1219 = vld [vmem:[#allocation8 + $0x1c] sm:$0xf]
    %v1220 = vld [vmem:[#allocation8 + $0x20] sm:$0xf]
    %v1221 = vld [vmem:[#allocation8 + $0x24] sm:$0xf]
    %v1222 = vld [vmem:[#allocation8 + $0x28] sm:$0xf]
    %v1223 = vld [vmem:[#allocation8 + $0x2c] sm:$0xf]
    %v1224 = vld [vmem:[#allocation8 + $0x30] sm:$0xf]
    %v1225 = vld [vmem:[#allocation8 + $0x34] sm:$0xf]
    %v1226 = vld [vmem:[#allocation8 + $0x38] sm:$0xf]
    %v1227 = vld [vmem:[#allocation8 + $0x3c] sm:$0xf]
    %v1228 = vld [vmem:[#allocation8 + $0x40] sm:$0xf]
    %v1229 = vld [vmem:[#allocation8 + $0x44] sm:$0xf]
    %v1230 = vld [vmem:[#allocation8 + $0x48] sm:$0xf]
    %v1231 = vld [vmem:[#allocation8 + $0x4c] sm:$0xf]
    %v1232 = vld [vmem:[#allocation8 + $0x50] sm:$0xf]
    %v1233 = vld [vmem:[#allocation8 + $0x54] sm:$0xf]
    %v1234 = vld [vmem:[#allocation8 + $0x58] sm:$0xf]
    %v1235 = vld [vmem:[#allocation8 + $0x5c] sm:$0xf]
    %v1236 = vld [vmem:[#allocation8 + $0x60] sm:$0xf]
    %v1237 = vld [vmem:[#allocation8 + $0x64] sm:$0xf]
    %v1238 = vld [vmem:[#allocation8 + $0x68] sm:$0xf]
    %v1239 = vld [vmem:[#allocation8 + $0x6c] sm:$0xf]
    %v1240 = vld [vmem:[#allocation8 + $0x70] sm:$0xf]
    %v1241 = vld [vmem:[#allocation8 + $0x74] sm:$0xf]
    %v1242 = vld [vmem:[#allocation8 + $0x78] sm:$0xf]
    %v1243 = vld [vmem:[#allocation8 + $0x7c] sm:$0xf]
    %v1244 = vld [vmem:[#allocation8 + $0x80] sm:$0xf]
    %v1245 = vld [vmem:[#allocation8 + $0x84] sm:$0xf]
    %v1246 = vld [vmem:[#allocation8 + $0x88] sm:$0xf]
    %v1247 = vld [vmem:[#allocation8 + $0x8c] sm:$0xf]
    %v1248 = vld [vmem:[#allocation8 + $0x90] sm:$0xf]
    %v1249 = vld [vmem:[#allocation8 + $0x94] sm:$0xf]
    %v1250 = vld [vmem:[#allocation8 + $0x98] sm:$0xf]
    %v1251 = vld [vmem:[#allocation8 + $0x9c] sm:$0xf]
    %v1252 = vld [vmem:[#allocation8 + $0xa0] sm:$0xf]
    %v1253 = vld [vmem:[#allocation8 + $0xa4] sm:$0xf]
    %v1254 = vld [vmem:[#allocation8 + $0xa8] sm:$0xf]
    %v1255 = vld [vmem:[#allocation8 + $0xac] sm:$0xf]
    %v1256 = vld [vmem:[#allocation8 + $0xb0] sm:$0xf]
    %v1257 = vld [vmem:[#allocation8 + $0xb4] sm:$0xf]
    %v1258 = vld [vmem:[#allocation8 + $0xb8] sm:$0xf]
    %v1259 = vld [vmem:[#allocation8 + $0xbc] sm:$0xf]
    %v1260 = vld [vmem:[#allocation8 + $0xc0] sm:$0xf]
    %v1261 = vld [vmem:[#allocation8 + $0xc4] sm:$0xf]
    %v1262 = vld [vmem:[#allocation8 + $0xc8] sm:$0xf]
    %v1263 = vld [vmem:[#allocation8 + $0xcc] sm:$0xf]
    %v1264 = vld [vmem:[#allocation8 + $0xd0] sm:$0xf]
    %v1265 = vld [vmem:[#allocation8 + $0xd4] sm:$0xf]
    %v1266 = vld [vmem:[#allocation8 + $0xd8] sm:$0xf]
    %v1267 = vld [vmem:[#allocation8 + $0xdc] sm:$0xf]
    %v1268 = vld [vmem:[#allocation8 + $0xe0] sm:$0xf]
    %v1269 = vld [vmem:[#allocation8 + $0xe4] sm:$0xf]
    %v1270 = vld [vmem:[#allocation8 + $0xe8] sm:$0xf]
    %v1271 = vld [vmem:[#allocation8 + $0xec] sm:$0xf]
    %v1272 = vld [vmem:[#allocation8 + $0xf0] sm:$0xf]
    %v1273 = vld [vmem:[#allocation8 + $0xf4] sm:$0xf]
    %v1274 = vld [vmem:[#allocation8 + $0xf8] sm:$0xf]
    %v1275 = vld [vmem:[#allocation8 + $0xfc] sm:$0xf]
    %v1276 = vld [vmem:[%s6] sm:$0x1]
    %v1278 = vlaneseq
    %v1279 = vshrl.u32 %v1278, 7
    %v1280 = vsub.s32 0, %v1279
    %v1281 = vrot.slane %v1276, %v1280
    %v1347 = vunpack.c.l.b16 %v1212
    %v1348 = vunpack.c.l.b16 %v1213
    %v1349 = vunpack.c.l.b16 %v1214
    %v1350 = vunpack.c.l.b16 %v1215
    %v1351 = vunpack.c.l.b16 %v1216
    %v1352 = vunpack.c.l.b16 %v1217
    %v1353 = vunpack.c.l.b16 %v1218
    %v1354 = vunpack.c.l.b16 %v1219
    %v1355 = vunpack.c.l.b16 %v1220
    %v1356 = vunpack.c.l.b16 %v1221
    %v1357 = vunpack.c.l.b16 %v1222
    %v1358 = vunpack.c.l.b16 %v1223
    %v1359 = vunpack.c.l.b16 %v1224
    %v1360 = vunpack.c.l.b16 %v1225
    %v1361 = vunpack.c.l.b16 %v1226
    %v1362 = vunpack.c.l.b16 %v1227
    %v1363 = vunpack.c.l.b16 %v1228
    %v1364 = vunpack.c.l.b16 %v1229
    %v1365 = vunpack.c.l.b16 %v1230
    %v1366 = vunpack.c.l.b16 %v1231
    %v1367 = vunpack.c.l.b16 %v1232
    %v1368 = vunpack.c.l.b16 %v1233
    %v1369 = vunpack.c.l.b16 %v1234
    %v1370 = vunpack.c.l.b16 %v1235
    %v1371 = vunpack.c.l.b16 %v1236
    %v1372 = vunpack.c.l.b16 %v1237
    %v1373 = vunpack.c.l.b16 %v1238
    %v1374 = vunpack.c.l.b16 %v1239
    %v1375 = vunpack.c.l.b16 %v1240
    %v1376 = vunpack.c.l.b16 %v1241
    %v1377 = vunpack.c.l.b16 %v1242
    %v1378 = vunpack.c.l.b16 %v1243
    %v1379 = vunpack.c.l.b16 %v1244
    %v1380 = vunpack.c.l.b16 %v1245
    %v1381 = vunpack.c.l.b16 %v1246
    %v1382 = vunpack.c.l.b16 %v1247
    %v1383 = vunpack.c.l.b16 %v1248
    %v1384 = vunpack.c.l.b16 %v1249
    %v1385 = vunpack.c.l.b16 %v1250
    %v1386 = vunpack.c.l.b16 %v1251
    %v1387 = vunpack.c.l.b16 %v1252
    %v1388 = vunpack.c.l.b16 %v1253
    %v1389 = vunpack.c.l.b16 %v1254
    %v1390 = vunpack.c.l.b16 %v1255
    %v1391 = vunpack.c.l.b16 %v1256
    %v1392 = vunpack.c.l.b16 %v1257
    %v1393 = vunpack.c.l.b16 %v1258
    %v1394 = vunpack.c.l.b16 %v1259
    %v1395 = vunpack.c.l.b16 %v1260
    %v1396 = vunpack.c.l.b16 %v1261
    %v1397 = vunpack.c.l.b16 %v1262
    %v1398 = vunpack.c.l.b16 %v1263
    %v1399 = vunpack.c.l.b16 %v1264
    %v1400 = vunpack.c.l.b16 %v1265
    %v1401 = vunpack.c.l.b16 %v1266
    %v1402 = vunpack.c.l.b16 %v1267
    %v1403 = vunpack.c.l.b16 %v1268
    %v1404 = vunpack.c.l.b16 %v1269
    %v1405 = vunpack.c.l.b16 %v1270
    %v1406 = vunpack.c.l.b16 %v1271
    %v1407 = vunpack.c.l.b16 %v1272
    %v1408 = vunpack.c.l.b16 %v1273
    %v1409 = vunpack.c.l.b16 %v1274
    %v1410 = vunpack.c.l.b16 %v1275
    %v1411 = vpack.c.b16 %v1348, %v1347
    %v1412 = vpack.c.b16 %v1350, %v1349
    %v1413 = vpack.c.b16 %v1352, %v1351
    %v1414 = vpack.c.b16 %v1354, %v1353
    %v1415 = vpack.c.b16 %v1356, %v1355
    %v1416 = vpack.c.b16 %v1358, %v1357
    %v1417 = vpack.c.b16 %v1360, %v1359
    %v1418 = vpack.c.b16 %v1362, %v1361
    %v1419 = vpack.c.b16 %v1364, %v1363
    %v1420 = vpack.c.b16 %v1366, %v1365
    %v1421 = vpack.c.b16 %v1368, %v1367
    %v1422 = vpack.c.b16 %v1370, %v1369
    %v1423 = vpack.c.b16 %v1372, %v1371
    %v1424 = vpack.c.b16 %v1374, %v1373
    %v1425 = vpack.c.b16 %v1376, %v1375
    %v1426 = vpack.c.b16 %v1378, %v1377
    %v1427 = vpack.c.b16 %v1380, %v1379
    %v1428 = vpack.c.b16 %v1382, %v1381
    %v1429 = vpack.c.b16 %v1384, %v1383
    %v1430 = vpack.c.b16 %v1386, %v1385
    %v1431 = vpack.c.b16 %v1388, %v1387
    %v1432 = vpack.c.b16 %v1390, %v1389
    %v1433 = vpack.c.b16 %v1392, %v1391
    %v1434 = vpack.c.b16 %v1394, %v1393
    %v1435 = vpack.c.b16 %v1396, %v1395
    %v1436 = vpack.c.b16 %v1398, %v1397
    %v1437 = vpack.c.b16 %v1400, %v1399
    %v1438 = vpack.c.b16 %v1402, %v1401
    %v1439 = vpack.c.b16 %v1404, %v1403
    %v1440 = vpack.c.b16 %v1406, %v1405
    %v1441 = vpack.c.b16 %v1408, %v1407
    %v1442 = vpack.c.b16 %v1410, %v1409
    %1475 = vmatprep.subr.bf16.mxu0 0
    %1476 = vmatpush1.bf16.msra.mxu0 %v1411
    %1477 = vmatprep.subr.bf16.mxu0 0
    %1478 = vmatpush1.bf16.msra.mxu0 %v1412
    %1479 = vmatprep.subr.bf16.mxu0 0
    %1480 = vmatpush1.bf16.msra.mxu0 %v1413
    %1481 = vmatprep.subr.bf16.mxu0 0
    %1482 = vmatpush1.bf16.msra.mxu0 %v1414
    %1483 = vmatprep.subr.bf16.mxu0 0
    %1484 = vmatpush1.bf16.msra.mxu0 %v1415
    %1485 = vmatprep.subr.bf16.mxu0 0
    %1486 = vmatpush1.bf16.msra.mxu0 %v1416
    %1487 = vmatprep.subr.bf16.mxu0 0
    %1488 = vmatpush1.bf16.msra.mxu0 %v1417
    %1489 = vmatprep.subr.bf16.mxu0 0
    %1490 = vmatpush1.bf16.msra.mxu0 %v1418
    %1491 = vmatprep.subr.bf16.mxu0 0
    %1492 = vmatpush1.bf16.msra.mxu0 %v1419
    %1493 = vmatprep.subr.bf16.mxu0 0
    %1494 = vmatpush1.bf16.msra.mxu0 %v1420
    %1495 = vmatprep.subr.bf16.mxu0 0
    %1496 = vmatpush1.bf16.msra.mxu0 %v1421
    %1497 = vmatprep.subr.bf16.mxu0 0
    %1498 = vmatpush1.bf16.msra.mxu0 %v1422
    %1499 = vmatprep.subr.bf16.mxu0 0
    %1500 = vmatpush1.bf16.msra.mxu0 %v1423
    %1501 = vmatprep.subr.bf16.mxu0 0
    %1502 = vmatpush1.bf16.msra.mxu0 %v1424
    %1503 = vmatprep.subr.bf16.mxu0 0
    %1504 = vmatpush1.bf16.msra.mxu0 %v1425
    %1505 = vmatprep.subr.bf16.mxu0 0
    %1506 = vmatpush1.bf16.msra.mxu0 %v1426
    %1507 = vmatprep.mubr.bf16.mxu0 %v1209
    %1508 = vmatmul.mubr.bf16.gmra.mrb[0].mxu0 %v1208
    %v1509 = vpop.f32.mrb[0].mxu0
    %v1510 = vadd.f32 %v1281, %v1509
    %v1511 = vpop.f32.mrb[0].mxu0
    %v1512 = vpop.f32.mrb[0].mxu0
    %v1513 = vpop.f32.mrb[0].mxu0
    %1514 = vdwg.mxu0
    %1515 = vmatprep.subr.bf16.mxu0 0
    %1516 = vmatpush1.bf16.msra.mxu0 %v1427
    %1517 = vmatprep.subr.bf16.mxu0 0
    %1518 = vmatpush1.bf16.msra.mxu0 %v1428
    %1519 = vmatprep.subr.bf16.mxu0 0
    %1520 = vmatpush1.bf16.msra.mxu0 %v1429
    %1521 = vmatprep.subr.bf16.mxu0 0
    %1522 = vmatpush1.bf16.msra.mxu0 %v1430
    %1523 = vmatprep.subr.bf16.mxu0 0
    %1524 = vmatpush1.bf16.msra.mxu0 %v1431
    %1525 = vmatprep.subr.bf16.mxu0 0
    %1526 = vmatpush1.bf16.msra.mxu0 %v1432
    %1527 = vmatprep.subr.bf16.mxu0 0
    %1528 = vmatpush1.bf16.msra.mxu0 %v1433
    %1529 = vmatprep.subr.bf16.mxu0 0
    %1530 = vmatpush1.bf16.msra.mxu0 %v1434
    %1531 = vmatprep.subr.bf16.mxu0 0
    %1532 = vmatpush1.bf16.msra.mxu0 %v1435
    %1533 = vmatprep.subr.bf16.mxu0 0
    %1534 = vmatpush1.bf16.msra.mxu0 %v1436
    %1535 = vmatprep.subr.bf16.mxu0 0
    %1536 = vmatpush1.bf16.msra.mxu0 %v1437
    %1537 = vmatprep.subr.bf16.mxu0 0
    %1538 = vmatpush1.bf16.msra.mxu0 %v1438
    %1539 = vmatprep.subr.bf16.mxu0 0
    %1540 = vmatpush1.bf16.msra.mxu0 %v1439
    %1541 = vmatprep.subr.bf16.mxu0 0
    %1542 = vmatpush1.bf16.msra.mxu0 %v1440
    %1543 = vmatprep.subr.bf16.mxu0 0
    %1544 = vmatpush1.bf16.msra.mxu0 %v1441
    %1545 = vmatprep.subr.bf16.mxu0 0
    %1546 = vmatpush1.bf16.msra.mxu0 %v1442
    %1547 = vmatprep.mubr.bf16.mxu0 %v1211
    %1548 = vmatmul.mubr.bf16.gmra.mrb[0].mxu0 %v1210
    %v1549 = vpop.f32.mrb[0].mxu0
    %v1550 = vadd.f32 %v1510, %v1549
    %v1551 = vpop.f32.mrb[0].mxu0
    %v1552 = vpop.f32.mrb[0].mxu0
    %v1553 = vpop.f32.mrb[0].mxu0
    %1554 = vdwg.mxu0
    %vm1555 = vcmask 64512
    %1556 = vst.msk [vmem:[#allocation10] sm:$0xff] %vm1555, %v1550
    // Predicated region
    $region46: #{tpu_custom_call.1} parent=1 // pred_check
      _
    $region47: #{tpu_custom_call.1} parent=1 // pred_check_branch
      %1558 = sbr.rel (0) target = $region49
    $region48: #{tpu_custom_call.1} parent=1 // pred_region
      %s1560 = ssub.s32 128, 128
      %1561 = vsyncadd [#allocation4], %s1560
      %s1563 = sshll.u32 [#allocation10], 4
      %s1564 = int_to_ptr.vmem [resolvable:$true] %s1563
      %1566 = dma.vmem_to_hbm [thread:$0]  %s1564, 128, %s7, [#allocation4]
    $region49: #{tpu_custom_call.1} parent=1 // pred_fallthru
      _
    // Predicated region
    $region50: #{tpu_custom_call.1} parent=1 // pred_check
      _
    $region51: #{tpu_custom_call.1} parent=1 // pred_check_branch
      %1568 = sbr.rel (0) target = $region53
    $region52: #{tpu_custom_call.1} parent=1 // pred_region
      %1569 = dma.done [#allocation4], 128
    $region53: #{tpu_custom_call.1} parent=1 // pred_fallthru
      _
    %1570 = vsyncpa [#allocation3], 1
    %1571 = vsyncpa [#allocation6], 1
    %1572 = vsyncpa [#allocation9], 1
    %1573 = vsyncpa [#allocation4], 1

</llo_original>
